<compile_context>
chip_gen: v6e
topology: v6e:2x2x1
jax: 0.10.0
libtpu: 0.0.40
codegen_flags: <defaults>
</compile_context>

<pallas_src>
import math

import jax
import jax.numpy as jnp
from jax.experimental import pallas as pl
from jax.experimental.pallas import tpu as pltpu


def attention_kernel(lhs_ref, slab_ref, out_ref):
    # lhs_ref : (B*N, D+2H)   row (b, n) = [input[b, n] | hidden[b] | cell[b]]
    # slab_ref: (D+2H+1, D)   rows       = [U ; W ; v^T]
    # out_ref : (B, N)
    B, N = out_ref.shape
    K = lhs_ref.shape[1]            # D + 2H (static; 96 -> sublane-aligned)

    # Single fused MXU pass: input@U + hidden@W[:H] + cell@W[H:]   -> (B*N, D)
    pre = jnp.dot(lhs_ref[...], slab_ref[:K, :],
                  preferred_element_type=jnp.float32)
    act = jnp.tanh(pre)                                            # EUP

    # v-projection on the VPU + lane reduce (no extra MXU round trip).
    v_row = slab_ref[K:K + 1, :]                                   # (1, D)
    logits = jnp.sum(act * v_row, axis=-1, keepdims=True)          # (B*N, 1)
    logits = logits.reshape(B, N)   # tiny (16-value) relayout into output layout

    # Numerically-stable softmax over the N samples of each batch row.
    m = jnp.max(logits, axis=-1, keepdims=True)
    e = jnp.exp(logits - m)
    denom = jnp.sum(e, axis=-1, keepdims=True)
    out_ref[...] = (e * pl.reciprocal(denom, approx=False)).astype(out_ref.dtype)


def pack_weights(W, U, v):
    """Pack [U; W; v^T] into one (D + 2H + 1, D) slab.  Do this ONCE at init."""
    D = U.shape[0]
    return jnp.concatenate([U, W, v.reshape(1, D)], axis=0)


def attention_module(hidden_state, cell_state, inp, weight_slab):
    """Pallas implementation of AttentionModule.forward.

    `weight_slab` is the pre-packed [U; W; v^T] slab from pack_weights().
    """
    B, H = hidden_state.shape
    _, N, D = inp.shape
    K = D + 2 * H
    assert weight_slab.shape == (K + 1, D)
    # Alignment note: K = D + 2H should be a multiple of 8 so the in-kernel
    # slab slices stay sublane-aligned (true here: 96).  Results are correct
    # either way; only the "no hidden copies" property depends on it.

    # Wrapper-side layout plumbing (fused by XLA; cuts kernel input DMAs to 2):
    #   augmented LHS row (b, n) = [input[b, n] | hidden[b] | cell[b]]
    hc = jnp.concatenate([hidden_state, cell_state], axis=-1)           # (B, 2H)
    lhs_aug = jnp.concatenate(
        [inp.reshape(B * N, D), jnp.repeat(hc, N, axis=0)], axis=-1)    # (B*N, K)

    flops = 2 * B * N * K * D + 2 * B * N * D + 3 * B * N
    transcendentals = B * N * D + B * N                                 # tanh + exp
    bytes_accessed = 4 * (B * N * K + (K + 1) * D + B * N)

    return pl.pallas_call(
        attention_kernel,
        out_shape=jax.ShapeDtypeStruct((B, N), jnp.float32),
        in_specs=[
            pl.BlockSpec(memory_space=pltpu.MemorySpace.VMEM),  # augmented LHS
            pl.BlockSpec(memory_space=pltpu.MemorySpace.VMEM),  # [U; W; v] slab
        ],
        out_specs=pl.BlockSpec(memory_space=pltpu.MemorySpace.VMEM),
        cost_estimate=pl.CostEstimate(
            flops=flops,
            transcendentals=transcendentals,
            bytes_accessed=bytes_accessed,
        ),
    )(lhs_aug, weight_slab)


def init_params(key, hidden_size, dimension):
    """Deterministic init matching reset_parameters: U(-stdv, stdv), stdv=1/sqrt(H)."""
    stdv = 1.0 / math.sqrt(hidden_size)
    kW, kU, kv = jax.random.split(key, 3)
    W = jax.random.uniform(kW, (hidden_size * 2, dimension), jnp.float32, -stdv, stdv)
    U = jax.random.uniform(kU, (dimension, dimension), jnp.float32, -stdv, stdv)
    v = jax.random.uniform(kv, (dimension, 1), jnp.float32, -stdv, stdv)
    return W, U, v


def reference(hidden_state, cell_state, inp, W, U, v):
    hidden = jnp.concatenate([hidden_state, cell_state], axis=-1)
    iw = jnp.einsum("bnd,de->bne", inp, U)
    hw = (hidden @ W)[:, None, :]
    logits = jnp.squeeze(jnp.tanh(iw + hw) @ v, axis=-1)
    return jax.nn.softmax(logits, axis=-1)


if __name__ == "__main__":
    B, N = 2, 8          # batch, num_samples
    hidden_size = 32
    dimension = 32

    key = jax.random.PRNGKey(0)
    k_h, k_c, k_x, k_p = jax.random.split(key, 4)
    hidden_state = jax.random.normal(k_h, (B, hidden_size), jnp.float32)
    cell_state = jax.random.normal(k_c, (B, hidden_size), jnp.float32)
    inp = jax.random.normal(k_x, (B, N, dimension), jnp.float32)
    W, U, v = init_params(k_p, hidden_size, dimension)

    # Weights are packed once (init-time), not per call.
    weight_slab = jax.block_until_ready(pack_weights(W, U, v))

    score = attention_module(hidden_state, cell_state, inp, weight_slab)
    score = jax.block_until_ready(score)

    ref = reference(hidden_state, cell_state, inp, W, U, v)
    assert score.shape == (B, N)
    assert jnp.allclose(score, ref, atol=1e-5, rtol=1e-5)
    assert jnp.allclose(jnp.sum(score, axis=-1), 1.0, atol=1e-5)

    print("KERNEL_OK")
</pallas_src>

<mosaic_0001>
module attributes {stable_mosaic.version = 11 : i64} {
  func.func @attention_kernel(%arg0: memref<16x96xf32, #tpu.memory_space<vmem>>, %arg1: memref<97x32xf32, #tpu.memory_space<vmem>>, %arg2: memref<2x8xf32, #tpu.memory_space<vmem>>) attributes {dimension_semantics = [], scalar_prefetch = 0 : i64, scratch_operands = 0 : i64, tpu.core_type = #tpu.core_type<tc>} {
    %c0 = arith.constant 0 : index
    %c0_0 = arith.constant 0 : index
    %0 = vector.load %arg0[%c0, %c0_0] : memref<16x96xf32, #tpu.memory_space<vmem>>, vector<16x96xf32>
    %c0_1 = arith.constant 0 : index
    %c0_2 = arith.constant 0 : index
    %1 = vector.load %arg1[%c0_1, %c0_2] : memref<97x32xf32, #tpu.memory_space<vmem>>, vector<96x32xf32>
    %cst = arith.constant dense<0.000000e+00> : vector<16x32xf32>
    %2 = tpu.matmul %0, %1, %cst {dimension_numbers = #tpu.dot_dimension_numbers<[1], [0], [0], [1], [0, 0, 1, 1], [], []>} : vector<16x96xf32>, vector<96x32xf32>, vector<16x32xf32> -> vector<16x32xf32>
    %3 = math.tanh %2 : vector<16x32xf32>
    %c96 = arith.constant 96 : index
    %c0_3 = arith.constant 0 : index
    %4 = vector.load %arg1[%c96, %c0_3] : memref<97x32xf32, #tpu.memory_space<vmem>>, vector<1x32xf32>
    %5 = vector.broadcast %4 : vector<1x32xf32> to vector<16x32xf32>
    %6 = arith.mulf %3, %5 : vector<16x32xf32>
    %cst_4 = arith.constant dense<0.000000e+00> : vector<16xf32>
    %7 = vector.multi_reduction <add>, %6, %cst_4 [1] : vector<16x32xf32> to vector<16xf32>
    %8 = vector.shape_cast %7 : vector<16xf32> to vector<16x1xf32>
    %9 = vector.shape_cast %8 : vector<16x1xf32> to vector<2x8xf32>
    %cst_5 = arith.constant dense<0xFF800000> : vector<2xf32>
    %10 = vector.multi_reduction <maximumf>, %9, %cst_5 [1] : vector<2x8xf32> to vector<2xf32>
    %11 = vector.shape_cast %10 : vector<2xf32> to vector<2x1xf32>
    %12 = vector.broadcast %11 : vector<2x1xf32> to vector<2x8xf32>
    %13 = arith.subf %9, %12 : vector<2x8xf32>
    %14 = math.exp %13 : vector<2x8xf32>
    %cst_6 = arith.constant dense<0.000000e+00> : vector<2xf32>
    %15 = vector.multi_reduction <add>, %14, %cst_6 [1] : vector<2x8xf32> to vector<2xf32>
    %16 = vector.shape_cast %15 : vector<2xf32> to vector<2x1xf32>
    %17 = tpu.reciprocal %16 : vector<2x1xf32> -> vector<2x1xf32>
    %18 = vector.broadcast %17 : vector<2x1xf32> to vector<2x8xf32>
    %19 = arith.mulf %14, %18 : vector<2x8xf32>
    %c0_7 = arith.constant 0 : index
    %c0_8 = arith.constant 0 : index
    %20 = vector.load %arg2[%c0_7, %c0_8] : memref<2x8xf32, #tpu.memory_space<vmem>>, vector<2x8xf32>
    tpu.vector_store %arg2[%c0_7, %c0_8], %19 {strides = array<i32>} : memref<2x8xf32, #tpu.memory_space<vmem>>, vector<2x8xf32>,
    return
  }
}

</mosaic_0001>

<llo_original>
// kernel: tpu_custom_call.1
$region0: #{tpu_custom_call.1}
  #allocation0 [shape = 'u32[]', space=smem, size = 0x4, offset = 0x4, fixed_abs, tag = 'smem constant byte address 0x4 - core index']
  #allocation1 [shape = 'u32[144,128]{1,0:T(1,128)}', space=vmem, size = 0x12000, scoped, tag = 'internal scratch']
  %s0 = inlined_call_operand.vmem [shape: f32[16,96], index: 0, kind: input, shape index: {}]
  %s1 = inlined_call_operand.vmem [shape: f32[97,32], index: 1, kind: input, shape index: {}]
  %s2 = inlined_call_operand.hbm [shape: f32[2,8], index: 2, kind: output, shape index: {}]
  %s3 = sld [smem:[#allocation0]]
  $region18: #{tpu_custom_call.1} parent=0
    _
  %s5 = ssub.s32 1, %s3
  %s6 = scalar_select 0, %s5, %s3
  $region1: #{tpu_custom_call.1} parent=0
    #allocation2 [shape = 'u8[1024]{0}', space=vmem, size = 0x400, scoped, tag = 'output window, operand 0, single buffered']
    #allocation3 [shape = 's32[1]{0}', space=sflag, size = 0x4, scoped, tag = 'scoped memory for tpu_custom_call.1']
    %7 = vsyncpa [#allocation3], 0
    // Predicated region
    $region2: #{tpu_custom_call.1} parent=1 // pred_check
      _
    $region3: #{tpu_custom_call.1} parent=1 // pred_check_branch
      %9 = sbr.rel (0) target = $region5
    $region4: #{tpu_custom_call.1} parent=1 // pred_region
      _
    $region5: #{tpu_custom_call.1} parent=1 // pred_fallthru
      _
    // Predicated region
    $region6: #{tpu_custom_call.1} parent=1 // pred_check
      _
    $region7: #{tpu_custom_call.1} parent=1 // pred_check_branch
      %11 = sbr.rel (0) target = $region9
    $region8: #{tpu_custom_call.1} parent=1 // pred_region
      _
    $region9: #{tpu_custom_call.1} parent=1 // pred_fallthru
      _
    %v12 = vld [vmem:[%s0] sm:$0xff]
    %v13 = vld [vmem:[%s0 + $0x8] sm:$0xff]
    %v14 = vld [vmem:[%s1] sm:$0xff]
    %v15 = vld [vmem:[%s1 + $0x8] sm:$0xff]
    %v16 = vld [vmem:[%s1 + $0x10] sm:$0xff]
    %v17 = vld [vmem:[%s1 + $0x18] sm:$0xff]
    %v18 = vld [vmem:[%s1 + $0x20] sm:$0xff]
    %v19 = vld [vmem:[%s1 + $0x28] sm:$0xff]
    %v20 = vld [vmem:[%s1 + $0x30] sm:$0xff]
    %v21 = vld [vmem:[%s1 + $0x38] sm:$0xff]
    %v22 = vld [vmem:[%s1 + $0x40] sm:$0xff]
    %v23 = vld [vmem:[%s1 + $0x48] sm:$0xff]
    %v24 = vld [vmem:[%s1 + $0x50] sm:$0xff]
    %v25 = vld [vmem:[%s1 + $0x58] sm:$0xff]
    %vm26 = vcmask 785408
    %v28 = vsel %vm26, %v12, 0
    %v31 = vsel %vm26, %v13, 0
    %33 = vmatprep.subr.mxu0 0.0
    %34 = vmatpush1.msra.mxu0 0.0
    %35 = vmatprep.subr.mxu0 0.0
    %36 = vmatpush1.msra.mxu0 0.0
    %37 = vmatprep.subr.mxu0 0.0
    %38 = vmatpush1.msra.mxu0 0.0
    %39 = vmatprep.subr.mxu0 0.0
    %40 = vmatpush1.msra.mxu0 0.0
    %41 = vmatprep.subr.mxu0 0.0
    %42 = vmatpush1.msra.mxu0 %v25
    %43 = vmatprep.subr.mxu0 0.0
    %44 = vmatpush1.msra.mxu0 %v24
    %45 = vmatprep.subr.mxu0 0.0
    %46 = vmatpush1.msra.mxu0 %v23
    %47 = vmatprep.subr.mxu0 0.0
    %48 = vmatpush1.msra.mxu0 %v22
    %49 = vmatprep.subr.mxu0 0.0
    %50 = vmatpush1.msra.mxu0 %v21
    %51 = vmatprep.subr.mxu0 0.0
    %52 = vmatpush1.msra.mxu0 %v20
    %53 = vmatprep.subr.mxu0 0.0
    %54 = vmatpush1.msra.mxu0 %v19
    %55 = vmatprep.subr.mxu0 0.0
    %56 = vmatpush1.msra.mxu0 %v18
    %57 = vmatprep.subr.mxu0 0.0
    %58 = vmatpush1.msra.mxu0 %v17
    %59 = vmatprep.subr.mxu0 0.0
    %60 = vmatpush1.msra.mxu0 %v16
    %61 = vmatprep.subr.mxu0 0.0
    %62 = vmatpush1.msra.mxu0 %v15
    %63 = vmatprep.subr.mxu0 0.0
    %64 = vmatpush1.msra.mxu0 %v14
    %65 = vmatprep.subr.mxu0 0.0
    %66 = vmatpush2.msra.mxu0 0.0
    %67 = vmatprep.subr.mxu0 0.0
    %68 = vmatpush2.msra.mxu0 0.0
    %69 = vmatprep.subr.mxu0 0.0
    %70 = vmatpush2.msra.mxu0 0.0
    %71 = vmatprep.subr.mxu0 0.0
    %72 = vmatpush2.msra.mxu0 0.0
    %73 = vmatprep.subr.mxu0 0.0
    %74 = vmatpush2.msra.mxu0 0.0
    %75 = vmatprep.subr.mxu0 0.0
    %76 = vmatpush2.msra.mxu0 0.0
    %77 = vmatprep.subr.mxu0 0.0
    %78 = vmatpush2.msra.mxu0 0.0
    %79 = vmatprep.subr.mxu0 0.0
    %80 = vmatpush2.msra.mxu0 0.0
    %81 = vmatprep.subr.mxu0 0.0
    %82 = vmatpush2.msra.mxu0 0.0
    %83 = vmatprep.subr.mxu0 0.0
    %84 = vmatpush2.msra.mxu0 0.0
    %85 = vmatprep.subr.mxu0 0.0
    %86 = vmatpush2.msra.mxu0 0.0
    %87 = vmatprep.subr.mxu0 0.0
    %88 = vmatpush2.msra.mxu0 0.0
    %89 = vmatprep.subr.mxu0 0.0
    %90 = vmatpush2.msra.mxu0 0.0
    %91 = vmatprep.subr.mxu0 0.0
    %92 = vmatpush2.msra.mxu0 0.0
    %93 = vmatprep.subr.mxu0 0.0
    %94 = vmatpush2.msra.mxu0 0.0
    %95 = vmatprep.subr.mxu0 0.0
    %96 = vmatpush2.msra.mxu0 0.0
    %97 = vmatprep.mubr.f32.mxu0 0.0
    %98 = vmatmul.mubr.f32.gmra.mxu0 %v28
    %v99 = vpop.f32.mrf.mxu0
    %v100 = vadd.f32 0.0, %v99
    %v101 = vpop.f32.mrf.mxu0
    %102 = vmatprep.mubr.f32.mxu0 0.0
    %103 = vmatmul.mubr.f32.gmra.mxu0 %v31
    %v104 = vpop.f32.mrf.mxu0
    %v105 = vadd.f32 0.0, %v104
    %v106 = vpop.f32.mrf.mxu0
    %107 = vdwg.mxu0
    %v108 = vtanh.pop %v100
    %v109 = vtanh.pop %v105
    %v110 = vld [vmem:[%s1 + $0x60] sm:$0x1]
    %v111 = vlaneseq
    %v112 = vshrl.u32 %v111, 7
    %v113 = vsub.s32 0, %v112
    %v114 = vrot.slane %v110, %v113
    %v115 = vmul.f32 %v108, %v114
    %v116 = vmul.f32 %v109, %v114
    %vm117 = vcmask 261120
    %v118 = vsel %vm117, %v115, 0.0
    %119 = vadd.xlane.f32.xlu0 %v118
    %v120 = vpop.xlane.xlu0 %119
    %v121 = vsel %vm117, %v116, 0.0
    %122 = vadd.xlane.f32.xlu0 %v121
    %v123 = vpop.xlane.xlu0 %122
    %v126 = vlaneseq
    %v127 = vand.u32 %v126, 127
    %v128 = vlaneseq
    %v129 = vshrl.u32 %v128, 7
    %v130 = vsub.s32 %v127, %v129
    %v131 = vrot.slane %v120, %v130
    %v132 = vlaneseq
    %v133 = vshrl.u32 %v132, 7
    %v134 = vsub.s32 %v127, %v133
    %v135 = vrot.slane %v123, %v134
    %vm136 = vcmask 1041409
    %v137 = vsel %vm136, %v135, %v131
    %vm139 = vcmask 58368
    %v140 = vsel %vm139, %v137, -inf
    %141 = vmax.xlane.f32.xlu0 %v140
    %v142 = vpop.xlane.xlu0 %141
    %v144 = vlaneseq
    %v145 = vshrl.u32 %v144, 7
    %v146 = vsub.s32 0, %v145
    %v147 = vrot.slane %v142, %v146
    %v148 = vlaneseq
    %v149 = vshrl.u32 %v148, 7
    %v150 = vsub.s32 1, %v149
    %v151 = vrot.slane %v142, %v150
    %v154 = vsub.f32 %v120, %v147
    %v155 = vsub.f32 %v123, %v151
    %v156 = vmul.f32 %v154, 1.442695
    %v157 = vpow.pop %v156
    %v158 = vmul.f32 %v155, 1.442695
    %v159 = vpow.pop %v158
    %162 = vset.pattern.permute.xlu0 0
    %163 = vperm.xlu0 %162, %v157
    %v164 = vpop.permute.xlu0 %163
    %165 = vset.pattern.permute.xlu0 0
    %166 = vperm.xlu0 %165, %v159
    %v167 = vpop.permute.xlu0 %166
    %v168 = vlaneseq
    %v169 = vshrl.u32 %v168, 7
    %v170 = vsub.s32 %v127, %v169
    %v171 = vrot.slane %v164, %v170
    %v172 = vlaneseq
    %v173 = vshrl.u32 %v172, 7
    %v174 = vsub.s32 %v127, %v173
    %v175 = vrot.slane %v167, %v174
    %v176 = vsel %vm136, %v175, %v171
    %v178 = vsel %vm139, %v176, 0.0
    %179 = vadd.xlane.f32.xlu0 %v178
    %v180 = vpop.xlane.xlu0 %179
    %v181 = vrcp.pop %v180
    %v183 = vlaneseq
    %v184 = vshrl.u32 %v183, 7
    %v185 = vsub.s32 0, %v184
    %v186 = vrot.slane %v181, %v185
    %v187 = vlaneseq
    %v188 = vshrl.u32 %v187, 7
    %v189 = vsub.s32 1, %v188
    %v190 = vrot.slane %v181, %v189
    %v193 = vmul.f32 %v157, %v186
    %v194 = vmul.f32 %v159, %v190
    %197 = vset.pattern.permute.xlu0 0
    %198 = vperm.xlu0 %197, %v193
    %v199 = vpop.permute.xlu0 %198
    %200 = vset.pattern.permute.xlu0 0
    %201 = vperm.xlu0 %200, %v194
    %v202 = vpop.permute.xlu0 %201
    %v203 = vlaneseq
    %v204 = vshrl.u32 %v203, 7
    %v205 = vsub.s32 %v127, %v204
    %v206 = vrot.slane %v199, %v205
    %v207 = vlaneseq
    %v208 = vshrl.u32 %v207, 7
    %v209 = vsub.s32 %v127, %v208
    %v210 = vrot.slane %v202, %v209
    %v211 = vsel %vm136, %v210, %v206
    %213 = vst.msk [vmem:[#allocation2] sm:$0x3] %vm139, %v211
    // Predicated region
    $region10: #{tpu_custom_call.1} parent=1 // pred_check
      _
    $region11: #{tpu_custom_call.1} parent=1 // pred_check_branch
      %215 = sbr.rel (0) target = $region13
    $region12: #{tpu_custom_call.1} parent=1 // pred_region
      %s217 = ssub.s32 32, 32
      %218 = vsyncadd [#allocation3], %s217
      %s220 = sshll.u32 [#allocation2], 4
      %s221 = int_to_ptr.vmem [resolvable:$true] %s220
      %223 = dma.vmem_to_hbm [thread:$0]  %s221, 32, %s2, [#allocation3]
    $region13: #{tpu_custom_call.1} parent=1 // pred_fallthru
      _
    // Predicated region
    $region14: #{tpu_custom_call.1} parent=1 // pred_check
      _
    $region15: #{tpu_custom_call.1} parent=1 // pred_check_branch
      %225 = sbr.rel (0) target = $region17
    $region16: #{tpu_custom_call.1} parent=1 // pred_region
      %226 = dma.done [#allocation3], 32
    $region17: #{tpu_custom_call.1} parent=1 // pred_fallthru
      _
    %227 = vsyncpa [#allocation3], 1

</llo_original>
